<compile_context>
chip_gen: v7x
topology: tpu7x:2x2x1
jax: 0.10.0
libtpu: 0.0.40
codegen_flags: <defaults>
</compile_context>

<pallas_src>
import jax
import jax.numpy as jnp
from jax.experimental import pallas as pl
from jax.experimental.pallas import tpu as pltpu


def _make_tversky_kernel(*, rows, t_rows, tiles_per_split, chunk_rows,
                         needs_mask):
    """Build the kernel with all tiling constants baked in statically."""
    n_full = t_rows // chunk_rows          # full chunks per tile
    tail = t_rows % chunk_rows             # remainder rows (multiple of 8)

    def kernel(pred_ref, target_ref, pt_out, p_out, t_out,
               pt_acc, p_acc, t_acc):
        j = pl.program_id(2)

        @pl.when(j == 0)
        def _init():
            pt_acc[...] = jnp.zeros_like(pt_acc)
            p_acc[...] = jnp.zeros_like(p_acc)
            t_acc[...] = jnp.zeros_like(t_acc)

        # Global spatial-tile index (un-clamped): tiles whose row range lies
        # past `rows` are fully masked out below, so the clamped DMA in the
        # index_map contributes exactly zero.
        jg = pl.program_id(0) * tiles_per_split + j
        row_base = jg * t_rows

        def chunk_sums(r0, nrows):
            """One pass over an (nrows, 128) sublane chunk -> 3 (8,128) sums."""
            p = pred_ref[0, pl.ds(r0, nrows), :].astype(jnp.float32)
            t = target_ref[0, pl.ds(r0, nrows), :].astype(jnp.float32)
            if needs_mask:
                gr = row_base + r0 + jax.lax.broadcasted_iota(
                    jnp.int32, (nrows, 128), 0)
                ok = gr < rows
                p = jnp.where(ok, p, 0.0)
                t = jnp.where(ok, t, 0.0)
            g = nrows // 8
            pt = (p * t).reshape(g, 8, 128).sum(axis=0)
            ps = p.reshape(g, 8, 128).sum(axis=0)
            ts = t.reshape(g, 8, 128).sum(axis=0)
            return pt, ps, ts

        zero = jnp.zeros((8, 128), jnp.float32)
        carry = (zero, zero, zero)

        if n_full > 0:
            def body(i, c):
                r0 = pl.multiple_of(i * chunk_rows, chunk_rows)
                pt, ps, ts = chunk_sums(r0, chunk_rows)
                return (c[0] + pt, c[1] + ps, c[2] + ts)
            carry = jax.lax.fori_loop(0, n_full, body, carry, unroll=2)

        if tail:
            pt, ps, ts = chunk_sums(n_full * chunk_rows, tail)
            carry = (carry[0] + pt, carry[1] + ps, carry[2] + ts)

        pt_acc[...] += carry[0]
        p_acc[...] += carry[1]
        t_acc[...] += carry[2]

        @pl.when(j == pl.num_programs(2) - 1)
        def _finalize():
            pt_out[0, 0, :, :] = pt_acc[...]
            p_out[0, 0, :, :] = p_acc[...]
            t_out[0, 0, :, :] = t_acc[...]

    return kernel


def tversky_loss(pred, target, *, tile_rows=4096, chunk_rows=64, nsplit=2):
    """pred: (N, 1, D, H, W), target: (N, D, H, W) -> scalar float32 loss.

    Inputs may be any float/integer dtype; they are streamed from HBM in their
    native dtype and cast to f32 in-register (feed narrow dtypes for speed).
    """
    pred = jnp.squeeze(pred, axis=1)                   # (N, D, H, W)
    n = pred.shape[0]
    p2 = pred.reshape(n, -1)                           # free reshape, native dtype
    t2 = target.reshape(n, -1)
    s = p2.shape[1]

    chunk_rows = max(8, (chunk_rows // 8) * 8)

    # Layout: (N, rows, 128) with rows a multiple of 8.  Padding (HBM copy) is
    # only taken when s is not a multiple of 8*128 == 1024 — real 3D volumes
    # essentially always are, so the common path is pad-free.  Tile-granularity
    # remainders are masked in-kernel, never padded.
    rows = pl.cdiv(s, 128)
    rows = ((rows + 7) // 8) * 8
    s_pad = rows * 128
    if s_pad != s:
        # TODO(synk): a fully pad-free ragged path would mask the <1024-element
        # remainder in-kernel; kept as a rare, exact zero-pad for layout simplicity.
        p2 = jnp.pad(p2, ((0, 0), (0, s_pad - s)))
        t2 = jnp.pad(t2, ((0, 0), (0, s_pad - s)))

    p3 = p2.reshape(n, rows, 128)
    t3 = t2.reshape(n, rows, 128)

    t_rows = min(tile_rows, rows)                      # multiple of 8
    n_tiles = pl.cdiv(rows, t_rows)

    # v7x megacore: split spatial tiles across a leading "parallel" axis so a
    # batch of 1-2 still keeps both TensorCores busy (no-op cost on v5e/v6e).
    nsplit = max(1, min(nsplit, n_tiles))
    tiles_per_split = pl.cdiv(n_tiles, nsplit)
    needs_mask = (nsplit * tiles_per_split * t_rows) != rows

    kernel = _make_tversky_kernel(rows=rows, t_rows=t_rows,
                                  tiles_per_split=tiles_per_split,
                                  chunk_rows=chunk_rows,
                                  needs_mask=needs_mask)

    def in_map(c, b, j):
        jg = c * tiles_per_split + j
        jg = jnp.minimum(jg, n_tiles - 1)   # clamp DMA; over-read tiles masked to 0
        return (b, jg, 0)

    out_map = lambda c, b, j: (c, b, 0, 0)

    part_shape = jax.ShapeDtypeStruct((nsplit, n, 8, 128), jnp.float32)
    bytes_accessed = (p3.size * p3.dtype.itemsize
                      + t3.size * t3.dtype.itemsize
                      + 3 * nsplit * n * 8 * 128 * 4)
    cost = pl.CostEstimate(flops=4 * n * s_pad, transcendentals=0,
                           bytes_accessed=bytes_accessed)

    pt_part, p_part, t_part = pl.pallas_call(
        kernel,
        out_shape=(part_shape, part_shape, part_shape),
        grid_spec=pltpu.PrefetchScalarGridSpec(
            num_scalar_prefetch=0,
            grid=(nsplit, n, tiles_per_split),
            in_specs=[
                pl.BlockSpec((1, t_rows, 128), in_map),
                pl.BlockSpec((1, t_rows, 128), in_map),
            ],
            out_specs=(
                pl.BlockSpec((1, 1, 8, 128), out_map),
                pl.BlockSpec((1, 1, 8, 128), out_map),
                pl.BlockSpec((1, 1, 8, 128), out_map),
            ),
            scratch_shapes=[
                pltpu.VMEM((8, 128), jnp.float32),   # sum(p*t) partials
                pltpu.VMEM((8, 128), jnp.float32),   # sum(p)   partials
                pltpu.VMEM((8, 128), jnp.float32),   # sum(t)   partials
            ],
        ),
        compiler_params=pltpu.CompilerParams(
            dimension_semantics=("parallel", "parallel", "arbitrary"),
            vmem_limit_bytes=32 << 20),
        cost_estimate=cost,
    )(p3, t3)

    # Tiny final reductions (3 * nsplit * N * 1024 floats) in plain JAX.
    sum_pt = pt_part.sum(axis=(0, 2, 3))               # (N,)
    sum_p = p_part.sum(axis=(0, 2, 3))
    sum_t = t_part.sum(axis=(0, 2, 3))
    # TP + 0.3*FP + 0.7*FN == 0.3*sum(p) + 0.7*sum(t)
    dice = sum_pt / (0.3 * sum_p + 0.7 * sum_t + 1.0)
    return jnp.clip((1.0 - dice).mean(), 0.0, 2.0)


def tversky_loss_ref(pred, target):
    """Plain-JAX reference mirroring the PyTorch module."""
    p = jnp.squeeze(pred, axis=1).astype(jnp.float32)
    t = target.astype(jnp.float32)
    tp = (p * t).sum(axis=(1, 2, 3))
    fp = (p * (1.0 - t)).sum(axis=(1, 2, 3))
    fn = ((1.0 - p) * t).sum(axis=(1, 2, 3))
    dice = tp / (tp + 0.3 * fp + 0.7 * fn + 1.0)
    return jnp.clip((1.0 - dice).mean(), 0.0, 2.0)


if __name__ == "__main__":
    key = jax.random.PRNGKey(0)

    def make_inputs(k, shape):
        k1, k2 = jax.random.split(k)
        n, c, d, h, w = shape
        # pred in [0,1] (post-sigmoid) streamed as bf16; target is a binary
        # mask streamed in a narrow native dtype (bf16) — cast to f32 in-kernel.
        pred = jax.nn.sigmoid(
            jax.random.normal(k1, shape, jnp.float32)).astype(jnp.bfloat16)
        target = (jax.random.uniform(k2, (n, d, h, w)) > 0.5).astype(jnp.bfloat16)
        return pred, target

    k1, k2, k3 = jax.random.split(key, 3)

    # 1) Main small case (single tile, no masking, no padding).
    pred, target = make_inputs(k1, (2, 1, 4, 16, 16))
    loss = jax.block_until_ready(tversky_loss(pred, target))
    ref = jax.block_until_ready(tversky_loss_ref(pred, target))
    assert jnp.allclose(loss, ref, rtol=1e-5, atol=1e-6), (loss, ref)

    # 2) Multi-tile + megacore split + in-kernel partial-tile masking
    #    (tile_rows forced small so the grid has several spatial tiles).
    pred2, target2 = make_inputs(k2, (1, 1, 8, 16, 48))
    loss2 = jax.block_until_ready(tversky_loss(pred2, target2, tile_rows=16))
    ref2 = jax.block_until_ready(tversky_loss_ref(pred2, target2))
    assert jnp.allclose(loss2, ref2, rtol=1e-5, atol=1e-6), (loss2, ref2)

    # 3) Ragged spatial size (not a multiple of 1024) -> exact zero-pad path.
    pred3, target3 = make_inputs(k3, (2, 1, 3, 10, 13))
    loss3 = jax.block_until_ready(tversky_loss(pred3, target3))
    ref3 = jax.block_until_ready(tversky_loss_ref(pred3, target3))
    assert jnp.allclose(loss3, ref3, rtol=1e-5, atol=1e-6), (loss3, ref3)

    print("KERNEL_OK")
</pallas_src>

<mosaic_0001>
module attributes {stable_mosaic.version = 11 : i64} {
  func.func @kernel(%arg0: i32, %arg1: i32, %arg2: i32, %arg3: memref<1x8x128xbf16, #tpu.memory_space<vmem>>, %arg4: memref<1x8x128xbf16, #tpu.memory_space<vmem>>, %arg5: memref<1x1x8x128xf32, #tpu.memory_space<vmem>>, %arg6: memref<1x1x8x128xf32, #tpu.memory_space<vmem>>, %arg7: memref<1x1x8x128xf32, #tpu.memory_space<vmem>>, %arg8: memref<8x128xf32, #tpu.memory_space<vmem>>, %arg9: memref<8x128xf32, #tpu.memory_space<vmem>>, %arg10: memref<8x128xf32, #tpu.memory_space<vmem>>) attributes {dimension_semantics = [#tpu.dimension_semantics<parallel>, #tpu.dimension_semantics<parallel>, #tpu.dimension_semantics<arbitrary>], iteration_bounds = array<i64: 1, 2, 1>, scalar_prefetch = 0 : i64, scratch_operands = 3 : i64, tpu.core_type = #tpu.core_type<tc>, window_params = [{transform_indices = @transform_0, window_bounds = array<i64: 1, 8, 128>}, {transform_indices = @transform_1, window_bounds = array<i64: 1, 8, 128>}, {transform_indices = @transform_2, window_bounds = array<i64: 1, 1, 8, 128>}, {transform_indices = @transform_3, window_bounds = array<i64: 1, 1, 8, 128>}, {transform_indices = @transform_4, window_bounds = array<i64: 1, 1, 8, 128>}]} {
    %c0_i32 = arith.constant 0 : i32
    %0 = arith.cmpi eq, %arg2, %c0_i32 : i32
    %1 = arith.extui %0 : i1 to i32
    %c0_i32_0 = arith.constant 0 : i32
    %2 = arith.cmpi ne, %1, %c0_i32_0 : i32
    scf.if %2 {
      %cst_23 = arith.constant 0.000000e+00 : f32
      %32 = vector.broadcast %cst_23 : f32 to vector<8x128xf32>
      %c0_24 = arith.constant 0 : index
      %c0_25 = arith.constant 0 : index
      %33 = vector.load %arg8[%c0_24, %c0_25] : memref<8x128xf32, #tpu.memory_space<vmem>>, vector<8x128xf32>
      tpu.vector_store %arg8[%c0_24, %c0_25], %32 {strides = array<i32>} : memref<8x128xf32, #tpu.memory_space<vmem>>, vector<8x128xf32>,
      %cst_26 = arith.constant 0.000000e+00 : f32
      %34 = vector.broadcast %cst_26 : f32 to vector<8x128xf32>
      %c0_27 = arith.constant 0 : index
      %c0_28 = arith.constant 0 : index
      %35 = vector.load %arg9[%c0_27, %c0_28] : memref<8x128xf32, #tpu.memory_space<vmem>>, vector<8x128xf32>
      tpu.vector_store %arg9[%c0_27, %c0_28], %34 {strides = array<i32>} : memref<8x128xf32, #tpu.memory_space<vmem>>, vector<8x128xf32>,
      %cst_29 = arith.constant 0.000000e+00 : f32
      %36 = vector.broadcast %cst_29 : f32 to vector<8x128xf32>
      %c0_30 = arith.constant 0 : index
      %c0_31 = arith.constant 0 : index
      %37 = vector.load %arg10[%c0_30, %c0_31] : memref<8x128xf32, #tpu.memory_space<vmem>>, vector<8x128xf32>
      tpu.vector_store %arg10[%c0_30, %c0_31], %36 {strides = array<i32>} : memref<8x128xf32, #tpu.memory_space<vmem>>, vector<8x128xf32>,
    } else {
    }
    %cst = arith.constant 0.000000e+00 : f32
    %3 = vector.broadcast %cst : f32 to vector<8x128xf32>
    %c0 = arith.constant 0 : index
    %c0_1 = arith.constant 0 : index
    %c0_2 = arith.constant 0 : index
    %4 = vector.load %arg3[%c0, %c0_1, %c0_2] : memref<1x8x128xbf16, #tpu.memory_space<vmem>>, vector<1x8x128xbf16>
    %5 = vector.shape_cast %4 : vector<1x8x128xbf16> to vector<8x128xbf16>
    %6 = arith.extf %5 : vector<8x128xbf16> to vector<8x128xf32>
    %c0_3 = arith.constant 0 : index
    %c0_4 = arith.constant 0 : index
    %c0_5 = arith.constant 0 : index
    %7 = vector.load %arg4[%c0_3, %c0_4, %c0_5] : memref<1x8x128xbf16, #tpu.memory_space<vmem>>, vector<1x8x128xbf16>
    %8 = vector.shape_cast %7 : vector<1x8x128xbf16> to vector<8x128xbf16>
    %9 = arith.extf %8 : vector<8x128xbf16> to vector<8x128xf32>
    %10 = arith.mulf %6, %9 : vector<8x128xf32>
    %11 = vector.shape_cast %10 : vector<8x128xf32> to vector<1x8x128xf32>
    %cst_6 = arith.constant dense<0.000000e+00> : vector<8x128xf32>
    %12 = vector.multi_reduction <add>, %11, %cst_6 [0] : vector<1x8x128xf32> to vector<8x128xf32>
    %13 = vector.shape_cast %6 : vector<8x128xf32> to vector<1x8x128xf32>
    %cst_7 = arith.constant dense<0.000000e+00> : vector<8x128xf32>
    %14 = vector.multi_reduction <add>, %13, %cst_7 [0] : vector<1x8x128xf32> to vector<8x128xf32>
    %15 = vector.shape_cast %9 : vector<8x128xf32> to vector<1x8x128xf32>
    %cst_8 = arith.constant dense<0.000000e+00> : vector<8x128xf32>
    %16 = vector.multi_reduction <add>, %15, %cst_8 [0] : vector<1x8x128xf32> to vector<8x128xf32>
    %17 = arith.addf %3, %12 : vector<8x128xf32>
    %18 = arith.addf %3, %14 : vector<8x128xf32>
    %19 = arith.addf %3, %16 : vector<8x128xf32>
    %c0_9 = arith.constant 0 : index
    %c0_10 = arith.constant 0 : index
    %20 = vector.load %arg8[%c0_9, %c0_10] : memref<8x128xf32, #tpu.memory_space<vmem>>, vector<8x128xf32>
    %21 = arith.addf %20, %17 : vector<8x128xf32>
    %c0_11 = arith.constant 0 : index
    %c0_12 = arith.constant 0 : index
    %22 = vector.load %arg8[%c0_11, %c0_12] : memref<8x128xf32, #tpu.memory_space<vmem>>, vector<8x128xf32>
    tpu.vector_store %arg8[%c0_11, %c0_12], %21 {strides = array<i32>} : memref<8x128xf32, #tpu.memory_space<vmem>>, vector<8x128xf32>,
    %c0_13 = arith.constant 0 : index
    %c0_14 = arith.constant 0 : index
    %23 = vector.load %arg9[%c0_13, %c0_14] : memref<8x128xf32, #tpu.memory_space<vmem>>, vector<8x128xf32>
    %24 = arith.addf %23, %18 : vector<8x128xf32>
    %c0_15 = arith.constant 0 : index
    %c0_16 = arith.constant 0 : index
    %25 = vector.load %arg9[%c0_15, %c0_16] : memref<8x128xf32, #tpu.memory_space<vmem>>, vector<8x128xf32>
    tpu.vector_store %arg9[%c0_15, %c0_16], %24 {strides = array<i32>} : memref<8x128xf32, #tpu.memory_space<vmem>>, vector<8x128xf32>,
    %c0_17 = arith.constant 0 : index
    %c0_18 = arith.constant 0 : index
    %26 = vector.load %arg10[%c0_17, %c0_18] : memref<8x128xf32, #tpu.memory_space<vmem>>, vector<8x128xf32>
    %27 = arith.addf %26, %19 : vector<8x128xf32>
    %c0_19 = arith.constant 0 : index
    %c0_20 = arith.constant 0 : index
    %28 = vector.load %arg10[%c0_19, %c0_20] : memref<8x128xf32, #tpu.memory_space<vmem>>, vector<8x128xf32>
    tpu.vector_store %arg10[%c0_19, %c0_20], %27 {strides = array<i32>} : memref<8x128xf32, #tpu.memory_space<vmem>>, vector<8x128xf32>,
    %c0_i32_21 = arith.constant 0 : i32
    %29 = arith.cmpi eq, %arg2, %c0_i32_21 : i32
    %30 = arith.extui %29 : i1 to i32
    %c0_i32_22 = arith.constant 0 : i32
    %31 = arith.cmpi ne, %30, %c0_i32_22 : i32
    scf.if %31 {
      %c0_23 = arith.constant 0 : index
      %c0_24 = arith.constant 0 : index
      %32 = vector.load %arg8[%c0_23, %c0_24] : memref<8x128xf32, #tpu.memory_space<vmem>>, vector<8x128xf32>
      %c0_25 = arith.constant 0 : index
      %c0_26 = arith.constant 0 : index
      %c0_27 = arith.constant 0 : index
      %c0_28 = arith.constant 0 : index
      %33 = vector.load %arg5[%c0_25, %c0_26, %c0_27, %c0_28] : memref<1x1x8x128xf32, #tpu.memory_space<vmem>>, vector<1x1x8x128xf32>
      %34 = vector.shape_cast %33 : vector<1x1x8x128xf32> to vector<8x128xf32>
      %35 = vector.shape_cast %32 : vector<8x128xf32> to vector<1x1x8x128xf32>
      tpu.vector_store %arg5[%c0_25, %c0_26, %c0_27, %c0_28], %35 {strides = array<i32>} : memref<1x1x8x128xf32, #tpu.memory_space<vmem>>, vector<1x1x8x128xf32>,
      %c0_29 = arith.constant 0 : index
      %c0_30 = arith.constant 0 : index
      %36 = vector.load %arg9[%c0_29, %c0_30] : memref<8x128xf32, #tpu.memory_space<vmem>>, vector<8x128xf32>
      %c0_31 = arith.constant 0 : index
      %c0_32 = arith.constant 0 : index
      %c0_33 = arith.constant 0 : index
      %c0_34 = arith.constant 0 : index
      %37 = vector.load %arg6[%c0_31, %c0_32, %c0_33, %c0_34] : memref<1x1x8x128xf32, #tpu.memory_space<vmem>>, vector<1x1x8x128xf32>
      %38 = vector.shape_cast %37 : vector<1x1x8x128xf32> to vector<8x128xf32>
      %39 = vector.shape_cast %36 : vector<8x128xf32> to vector<1x1x8x128xf32>
      tpu.vector_store %arg6[%c0_31, %c0_32, %c0_33, %c0_34], %39 {strides = array<i32>} : memref<1x1x8x128xf32, #tpu.memory_space<vmem>>, vector<1x1x8x128xf32>,
      %c0_35 = arith.constant 0 : index
      %c0_36 = arith.constant 0 : index
      %40 = vector.load %arg10[%c0_35, %c0_36] : memref<8x128xf32, #tpu.memory_space<vmem>>, vector<8x128xf32>
      %c0_37 = arith.constant 0 : index
      %c0_38 = arith.constant 0 : index
      %c0_39 = arith.constant 0 : index
      %c0_40 = arith.constant 0 : index
      %41 = vector.load %arg7[%c0_37, %c0_38, %c0_39, %c0_40] : memref<1x1x8x128xf32, #tpu.memory_space<vmem>>, vector<1x1x8x128xf32>
      %42 = vector.shape_cast %41 : vector<1x1x8x128xf32> to vector<8x128xf32>
      %43 = vector.shape_cast %40 : vector<8x128xf32> to vector<1x1x8x128xf32>
      tpu.vector_store %arg7[%c0_37, %c0_38, %c0_39, %c0_40], %43 {strides = array<i32>} : memref<1x1x8x128xf32, #tpu.memory_space<vmem>>, vector<1x1x8x128xf32>,
    } else {
    }
    return
  }
  func.func @transform_0(%arg0: i32, %arg1: i32, %arg2: i32) -> (i32, i32, i32) {
    %c1_i32 = arith.constant 1 : i32
    %0 = arith.muli %arg0, %c1_i32 : i32
    %1 = arith.addi %0, %arg2 : i32
    %c0_i32 = arith.constant 0 : i32
    %2 = arith.minsi %1, %c0_i32 : i32
    %c0_i32_0 = arith.constant 0 : i32
    %c0_i32_1 = arith.constant 0 : i32
    return %arg1, %2, %c0_i32_0 : i32, i32, i32
  }
  func.func @transform_1(%arg0: i32, %arg1: i32, %arg2: i32) -> (i32, i32, i32) {
    %c1_i32 = arith.constant 1 : i32
    %0 = arith.muli %arg0, %c1_i32 : i32
    %1 = arith.addi %0, %arg2 : i32
    %c0_i32 = arith.constant 0 : i32
    %2 = arith.minsi %1, %c0_i32 : i32
    %c0_i32_0 = arith.constant 0 : i32
    %c0_i32_1 = arith.constant 0 : i32
    return %arg1, %2, %c0_i32_0 : i32, i32, i32
  }
  func.func @transform_2(%arg0: i32, %arg1: i32, %arg2: i32) -> (i32, i32, i32, i32) {
    %c0_i32 = arith.constant 0 : i32
    %c0_i32_0 = arith.constant 0 : i32
    %c0_i32_1 = arith.constant 0 : i32
    return %arg0, %arg1, %c0_i32, %c0_i32_0 : i32, i32, i32, i32
  }
  func.func @transform_3(%arg0: i32, %arg1: i32, %arg2: i32) -> (i32, i32, i32, i32) {
    %c0_i32 = arith.constant 0 : i32
    %c0_i32_0 = arith.constant 0 : i32
    %c0_i32_1 = arith.constant 0 : i32
    return %arg0, %arg1, %c0_i32, %c0_i32_0 : i32, i32, i32, i32
  }
  func.func @transform_4(%arg0: i32, %arg1: i32, %arg2: i32) -> (i32, i32, i32, i32) {
    %c0_i32 = arith.constant 0 : i32
    %c0_i32_0 = arith.constant 0 : i32
    %c0_i32_1 = arith.constant 0 : i32
    return %arg0, %arg1, %c0_i32, %c0_i32_0 : i32, i32, i32, i32
  }
}

</mosaic_0001>

<llo_original>
// kernel: tpu_custom_call.1
$region0: #{tpu_custom_call.1}
  #allocation0 [shape = 'u32[]', space=smem, size = 0x4, offset = 0x4, fixed_abs, tag = 'smem constant byte address 0x4 - core index']
  #allocation1 [shape = 'u32[144,128]{1,0:T(1,128)}', space=vmem, size = 0x12000, scoped, tag = 'internal scratch']
  #allocation2 [shape = 'f32[8,128]{1,0:T(8,128)}', space=vmem, size = 0x1000, scoped, tag = 'scratch operand']
  #allocation3 [shape = 'f32[8,128]{1,0:T(8,128)}', space=vmem, size = 0x1000, scoped, tag = 'scratch operand']
  #allocation4 [shape = 'f32[8,128]{1,0:T(8,128)}', space=vmem, size = 0x1000, scoped, tag = 'scratch operand']
  %s0 = inlined_call_operand.hbm [shape: bf16[2,8,128], index: 0, kind: input, shape index: {}]
  %s1 = inlined_call_operand.hbm [shape: bf16[2,8,128], index: 1, kind: input, shape index: {}]
  %s2 = inlined_call_operand.hbm [shape: f32[1,2,8,128], index: 2, kind: output, shape index: {0}]
  %s3 = inlined_call_operand.hbm [shape: f32[1,2,8,128], index: 3, kind: output, shape index: {1}]
  %s4 = inlined_call_operand.hbm [shape: f32[1,2,8,128], index: 4, kind: output, shape index: {2}]
  %5 = xla_tuple %s2, %s3, %s4
  %s6 = sld [smem:[#allocation0]]
  $region73: #{tpu_custom_call.1} parent=0
    _
  %s8 = ssub.s32 1, %s6
  %s9 = scalar_select 0, %s8, %s6
  $region1: #{tpu_custom_call.1} parent=0
    #allocation5 [shape = 'u8[4096]{0}', space=vmem, size = 0x1000, scoped, tag = 'input window, operand 0']
    #allocation6 [shape = 's32[2]{0}', space=sflag, size = 0x8, scoped, tag = 'scoped memory for tpu_custom_call.1']
    #allocation7 [shape = 's32[2]{0}', space=sflag, size = 0x8, scoped, tag = 'scoped memory for tpu_custom_call.1']
    #allocation8 [shape = 'u8[4096]{0}', space=vmem, size = 0x1000, scoped, tag = 'input window, operand 1']
    #allocation9 [shape = 's32[2]{0}', space=sflag, size = 0x8, scoped, tag = 'scoped memory for tpu_custom_call.1']
    #allocation10 [shape = 'u8[8192]{0}', space=vmem, size = 0x2000, scoped, tag = 'output window, operand 0']
    #allocation11 [shape = 'u8[8192]{0}', space=vmem, size = 0x2000, scoped, tag = 'output window, operand 1']
    #allocation12 [shape = 's32[2]{0}', space=sflag, size = 0x8, scoped, tag = 'scoped memory for tpu_custom_call.1']
    #allocation13 [shape = 'u8[8192]{0}', space=vmem, size = 0x2000, scoped, tag = 'output window, operand 2']
    %10 = vsyncpa [#allocation6], 0
    %s11 = scalar_lea.sflag [#allocation6], 1
    %12 = vsyncpa %s11, 0
    %13 = vsyncpa [#allocation9], 0
    %s14 = scalar_lea.sflag [#allocation9], 1
    %15 = vsyncpa %s14, 0
    %16 = vsyncpa [#allocation7], 0
    %s17 = scalar_lea.sflag [#allocation7], 1
    %18 = vsyncpa %s17, 0
    %19 = vsyncpa [#allocation12], 0
    %s20 = scalar_lea.sflag [#allocation12], 1
    %21 = vsyncpa %s20, 0
    loop: start=0, step=1, limit=4
    $region2: #{tpu_custom_call.1} parent=1 // loop_pre_header
      _
    $region3: #{tpu_custom_call.1} parent=1 // loop_header
      %s23 = sphi 0, %s27
      %p24 = scmp.ge.s32.totalorder %s23, 4
      %s30 = sphi 0, %s49
      %s31 = sphi 0, %s45
      %s32 = sphi 0, %s41
      %s33 = sphi 0, %s30
      %s34 = sphi 0, %s31
      %s35 = sphi 0, %s32
      %s36 = sphi 0, %s33
      %s37 = sphi 0, %s34
      %s38 = sphi 0, %s35
      %s60 = sphi 0, %s62
      %s63 = sphi 0, %s60
      %s64 = sphi 0, %s63
      %s80 = sphi 0, %s64
      %s94 = sphi 0, %s96
      %s97 = sphi 0, %s94
      %s98 = sphi 0, %s97
      %s114 = sphi 0, %s98
      %s122 = sphi 0, %s124
      %s125 = sphi 0, %s122
      %s126 = sphi 0, %s125
      %s142 = sphi 0, %s126
      %s150 = sphi 0, %s152
      %s153 = sphi 0, %s150
      %s154 = sphi 0, %s153
      %s170 = sphi 0, %s154
      %s178 = sphi 0, %s180
      %s181 = sphi 0, %s178
      %s182 = sphi 0, %s181
      %s198 = sphi 0, %s182
    $region4: #{tpu_custom_call.1} parent=1 // loop_header_branch
      %26 = sbr.rel (%p24) target = $region8
    $region5: #{tpu_custom_call.1} parent=1 // loop_body
      %s28 = ssub.s32 %s23, 1
      %s29 = ssub.s32 %s23, 2
      %s39 = sadd.s32 1, %s32
      %p40 = scmp.ge.s32.totalorder %s39, 1
      %s41 = scalar_select %p40, 0, %s39
      %s42 = sadd.s32 1, %s31
      %s43 = scalar_select %p40, %s42, %s31
      %p44 = scmp.ge.s32.totalorder %s43, 2
      %s45 = scalar_select %p44, 0, %s43
      %s46 = sadd.s32 1, %s30
      %s47 = scalar_select %p44, %s46, %s30
      %p48 = scmp.ge.s32.totalorder %s47, 1
      %s49 = scalar_select %p48, 0, %s47
      %s50 = sadd.s32 %s30, %s32
      %p51 = scmp.lt.s32.totalorder %s50, 0
      %s52 = scalar_select %p51, %s50, 0
      %s53 = sadd.s32 %s49, %s41
      %p54 = scmp.lt.s32.totalorder %s53, 0
      %s55 = scalar_select %p54, %s53, 0
      %s56 = ssub.s32 %s31, %s45
      %s57 = ssub.s32 %s52, %s55
      %s58 = sor.u32 %s56, %s57
      %p59 = scmp.eq.s32.totalorder %s58, 0
      %s61 = sadd.s32 %s60, 1
      %s62 = scalar_select %p59, %s60, %s61
      %p65 = pneg %p59
      %p66 = scmp.eq.s32.totalorder %s23, 1
      %p67 = por %p65, %p66
      %p68 = scmp.ne.s32.totalorder %s60, %s63
      %p69 = scmp.eq.s32.totalorder %s23, 0
      %p70 = por %p68, %p69
      %p71 = scmp.ne.s32.totalorder %s60, %s63
      %p72 = scmp.eq.s32.totalorder %s28, 1
      %p73 = por %p71, %p72
      %p74 = scmp.ne.s32.totalorder %s63, %s64
      %p75 = scmp.eq.s32.totalorder %s28, 0
      %p76 = por %p74, %p75
      %p77 = scmp.ne.s32.totalorder %s63, %s64
      %p78 = scmp.eq.s32.totalorder %s29, 1
      %p79 = por %p77, %p78
      %p81 = scmp.ne.s32.totalorder %s64, %s80
      %p82 = scmp.eq.s32.totalorder %s29, 0
      %p83 = por %p81, %p82
      %s84 = sadd.s32 %s30, %s32
      %p85 = scmp.lt.s32.totalorder %s84, 0
      %s86 = scalar_select %p85, %s84, 0
      %s87 = sadd.s32 %s49, %s41
      %p88 = scmp.lt.s32.totalorder %s87, 0
      %s89 = scalar_select %p88, %s87, 0
      %s90 = ssub.s32 %s31, %s45
      %s91 = ssub.s32 %s86, %s89
      %s92 = sor.u32 %s90, %s91
      %p93 = scmp.eq.s32.totalorder %s92, 0
      %s95 = sadd.s32 %s94, 1
      %s96 = scalar_select %p93, %s94, %s95
      %p99 = pneg %p93
      %p100 = scmp.eq.s32.totalorder %s23, 1
      %p101 = por %p99, %p100
      %p102 = scmp.ne.s32.totalorder %s94, %s97
      %p103 = scmp.eq.s32.totalorder %s23, 0
      %p104 = por %p102, %p103
      %p105 = scmp.ne.s32.totalorder %s94, %s97
      %p106 = scmp.eq.s32.totalorder %s28, 1
      %p107 = por %p105, %p106
      %p108 = scmp.ne.s32.totalorder %s97, %s98
      %p109 = scmp.eq.s32.totalorder %s28, 0
      %p110 = por %p108, %p109
      %p111 = scmp.ne.s32.totalorder %s97, %s98
      %p112 = scmp.eq.s32.totalorder %s29, 1
      %p113 = por %p111, %p112
      %p115 = scmp.ne.s32.totalorder %s98, %s114
      %p116 = scmp.eq.s32.totalorder %s29, 0
      %p117 = por %p115, %p116
      %s118 = ssub.s32 %s30, %s49
      %s119 = ssub.s32 %s31, %s45
      %s120 = sor.u32 %s118, %s119
      %p121 = scmp.eq.s32.totalorder %s120, 0
      %s123 = sadd.s32 %s122, 1
      %s124 = scalar_select %p121, %s122, %s123
      %p127 = pneg %p121
      %p128 = scmp.eq.s32.totalorder %s23, 1
      %p129 = por %p127, %p128
      %p130 = scmp.ne.s32.totalorder %s122, %s125
      %p131 = scmp.eq.s32.totalorder %s23, 0
      %p132 = por %p130, %p131
      %p133 = scmp.ne.s32.totalorder %s122, %s125
      %p134 = scmp.eq.s32.totalorder %s28, 1
      %p135 = por %p133, %p134
      %p136 = scmp.ne.s32.totalorder %s125, %s126
      %p137 = scmp.eq.s32.totalorder %s28, 0
      %p138 = por %p136, %p137
      %p139 = scmp.ne.s32.totalorder %s125, %s126
      %p140 = scmp.eq.s32.totalorder %s29, 1
      %p141 = por %p139, %p140
      %p143 = scmp.ne.s32.totalorder %s126, %s142
      %p144 = scmp.eq.s32.totalorder %s29, 0
      %p145 = por %p143, %p144
      %s146 = ssub.s32 %s30, %s49
      %s147 = ssub.s32 %s31, %s45
      %s148 = sor.u32 %s146, %s147
      %p149 = scmp.eq.s32.totalorder %s148, 0
      %s151 = sadd.s32 %s150, 1
      %s152 = scalar_select %p149, %s150, %s151
      %p155 = pneg %p149
      %p156 = scmp.eq.s32.totalorder %s23, 1
      %p157 = por %p155, %p156
      %p158 = scmp.ne.s32.totalorder %s150, %s153
      %p159 = scmp.eq.s32.totalorder %s23, 0
      %p160 = por %p158, %p159
      %p161 = scmp.ne.s32.totalorder %s150, %s153
      %p162 = scmp.eq.s32.totalorder %s28, 1
      %p163 = por %p161, %p162
      %p164 = scmp.ne.s32.totalorder %s153, %s154
      %p165 = scmp.eq.s32.totalorder %s28, 0
      %p166 = por %p164, %p165
      %p167 = scmp.ne.s32.totalorder %s153, %s154
      %p168 = scmp.eq.s32.totalorder %s29, 1
      %p169 = por %p167, %p168
      %p171 = scmp.ne.s32.totalorder %s154, %s170
      %p172 = scmp.eq.s32.totalorder %s29, 0
      %p173 = por %p171, %p172
      %s174 = ssub.s32 %s30, %s49
      %s175 = ssub.s32 %s31, %s45
      %s176 = sor.u32 %s174, %s175
      %p177 = scmp.eq.s32.totalorder %s176, 0
      %s179 = sadd.s32 %s178, 1
      %s180 = scalar_select %p177, %s178, %s179
      %p183 = pneg %p177
      %p184 = scmp.eq.s32.totalorder %s23, 1
      %p185 = por %p183, %p184
      %p186 = scmp.ne.s32.totalorder %s178, %s181
      %p187 = scmp.eq.s32.totalorder %s23, 0
      %p188 = por %p186, %p187
      %p189 = scmp.ne.s32.totalorder %s178, %s181
      %p190 = scmp.eq.s32.totalorder %s28, 1
      %p191 = por %p189, %p190
      %p192 = scmp.ne.s32.totalorder %s181, %s182
      %p193 = scmp.eq.s32.totalorder %s28, 0
      %p194 = por %p192, %p193
      %p195 = scmp.ne.s32.totalorder %s181, %s182
      %p196 = scmp.eq.s32.totalorder %s29, 1
      %p197 = por %p195, %p196
      %p199 = scmp.ne.s32.totalorder %s182, %s198
      %p200 = scmp.eq.s32.totalorder %s29, 0
      %p201 = por %p199, %p200
      %p202 = scmp.le.s32.totalorder 1, %s23
      %p203 = scmp.lt.s32.totalorder %s23, 3
      %p204 = pnand %p202, %p203
      %p205 = pneg %p204
      // Predicated region
      $region9: #{tpu_custom_call.1} parent=5 // pred_check
        _
      $region10: #{tpu_custom_call.1} parent=5 // pred_check_branch
        %207 = sbr.rel (%p204) target = $region12
      $region11: #{tpu_custom_call.1} parent=5 // pred_region
        %s208 = ssub.s32 %s23, 1
      $region12: #{tpu_custom_call.1} parent=5 // pred_fallthru
        _
      %p209 = scmp.lt.s32.totalorder %s23, 2
      // Predicated region
      $region13: #{tpu_custom_call.1} parent=5 // pred_check
        %p210 = pneg %p209
      $region14: #{tpu_custom_call.1} parent=5 // pred_check_branch
        %212 = sbr.rel (%p210) target = $region16
      $region15: #{tpu_custom_call.1} parent=5 // pred_region
        // Predicated region
        $region17: #{tpu_custom_call.1} parent=15 // pred_check
          %p213 = pneg %p70
        $region18: #{tpu_custom_call.1} parent=15 // pred_check_branch
          %215 = sbr.rel (%p213) target = $region20
        $region19: #{tpu_custom_call.1} parent=15 // pred_region
          %s216 = sand.u32 %s60, 1
          %s217 = scalar_lea.sflag [#allocation6], %s216
          %s218 = sand.u32 %s60, 1
          %s219 = smul.addr %s218, 4
          %s220 = scalar_lea.vmem [#allocation5], %s219
          %s221 = sadd.s32 %s30, %s32
          %p222 = scmp.lt.s32.totalorder %s221, 0
          %s223 = scalar_select %p222, %s221, 0
          %s225 = ssub.s32 64, 64
          %226 = vsyncadd %s217, %s225
          %s227 = sadd.s32 %s223, %s31
          %s228 = smul.addr %s227, 64
          %s229 = scalar_lea.hbm %s0, %s228
          %s231 = sshll.u32 %s220, 4
          %s232 = int_to_ptr.vmem [resolvable:$true] %s231
          %234 = dma.hbm_to_vmem [thread:$0]  %s229, 64, %s232, %s217
        $region20: #{tpu_custom_call.1} parent=15 // pred_fallthru
          _
        // Predicated region
        $region21: #{tpu_custom_call.1} parent=15 // pred_check
          %p235 = pneg %p104
        $region22: #{tpu_custom_call.1} parent=15 // pred_check_branch
          %237 = sbr.rel (%p235) target = $region24
        $region23: #{tpu_custom_call.1} parent=15 // pred_region
          %s238 = sand.u32 %s94, 1
          %s239 = scalar_lea.sflag [#allocation9], %s238
          %s240 = sand.u32 %s94, 1
          %s241 = smul.addr %s240, 4
          %s242 = scalar_lea.vmem [#allocation8], %s241
          %s243 = sadd.s32 %s30, %s32
          %p244 = scmp.lt.s32.totalorder %s243, 0
          %s245 = scalar_select %p244, %s243, 0
          %s247 = ssub.s32 64, 64
          %248 = vsyncadd %s239, %s247
          %s249 = sadd.s32 %s245, %s31
          %s250 = smul.addr %s249, 64
          %s251 = scalar_lea.hbm %s1, %s250
          %s253 = sshll.u32 %s242, 4
          %s254 = int_to_ptr.vmem [resolvable:$true] %s253
          %256 = dma.hbm_to_vmem [thread:$0]  %s251, 64, %s254, %s239
        $region24: #{tpu_custom_call.1} parent=15 // pred_fallthru
          _
      $region16: #{tpu_custom_call.1} parent=5 // pred_fallthru
        _
      %p257 = scmp.le.s32.totalorder 1, %s23
      %p258 = scmp.lt.s32.totalorder %s23, 3
      %p259 = pnand %p257, %p258
      %p260 = pneg %p259
      // Predicated region
      $region25: #{tpu_custom_call.1} parent=5 // pred_check
        _
      $region26: #{tpu_custom_call.1} parent=5 // pred_check_branch
        %262 = sbr.rel (%p259) target = $region28
      $region27: #{tpu_custom_call.1} parent=5 // pred_region
        %s263 = ssub.s32 %s23, 1
        %s264 = sand.u32 %s63, 1
        %s265 = scalar_lea.sflag [#allocation6], %s264
        %s266 = sand.u32 %s63, 1
        %s267 = smul.addr %s266, 4
        %s268 = scalar_lea.vmem [#allocation5], %s267
        // Predicated region
        $region29: #{tpu_custom_call.1} parent=27 // pred_check
          %p269 = pneg %p76
        $region30: #{tpu_custom_call.1} parent=27 // pred_check_branch
          %271 = sbr.rel (%p269) target = $region32
        $region31: #{tpu_custom_call.1} parent=27 // pred_region
          %272 = dma.done %s265, 64
        $region32: #{tpu_custom_call.1} parent=27 // pred_fallthru
          _
        %s273 = sand.u32 %s97, 1
        %s274 = scalar_lea.sflag [#allocation9], %s273
        %s275 = sand.u32 %s97, 1
        %s276 = smul.addr %s275, 4
        %s277 = scalar_lea.vmem [#allocation8], %s276
        // Predicated region
        $region33: #{tpu_custom_call.1} parent=27 // pred_check
          %p278 = pneg %p110
        $region34: #{tpu_custom_call.1} parent=27 // pred_check_branch
          %280 = sbr.rel (%p278) target = $region36
        $region35: #{tpu_custom_call.1} parent=27 // pred_region
          %281 = dma.done %s274, 64
        $region36: #{tpu_custom_call.1} parent=27 // pred_fallthru
          _
        %s282 = sand.u32 %s63, 1
        %s283 = scalar_lea.sflag [#allocation6], %s282
        %s284 = sand.u32 %s63, 1
        %s285 = smul.addr %s284, 4
        %s286 = scalar_lea.vmem [#allocation5], %s285
        %p287 = pneg %p76
        %p288 = pneg %p73
        %s289 = sand.u32 %s97, 1
        %s290 = scalar_lea.sflag [#allocation9], %s289
        %s291 = sand.u32 %s97, 1
        %s292 = smul.addr %s291, 4
        %s293 = scalar_lea.vmem [#allocation8], %s292
        %p294 = pneg %p110
        %p295 = pneg %p107
        %p296 = pneg %p138
        %p297 = pneg %p135
        %s298 = sand.u32 %s125, 1
        %s299 = scalar_lea.sflag [#allocation7], %s298
        %s300 = sand.u32 %s125, 1
        %s301 = smul.addr %s300, 8
        %s302 = scalar_lea.vmem [#allocation10], %s301
        %p303 = pneg %p166
        %p304 = pneg %p163
        %s305 = sand.u32 %s28, 1
        %s306 = scalar_lea.sflag [#allocation12], %s305
        %s307 = sand.u32 %s153, 1
        %s308 = smul.addr %s307, 8
        %s309 = scalar_lea.vmem [#allocation11], %s308
        %p310 = pneg %p194
        %p311 = pneg %p191
        %s312 = sand.u32 %s28, 1
        %s313 = scalar_lea.sflag [#allocation12], %s312
        %s314 = sand.u32 %s181, 1
        %s315 = smul.addr %s314, 8
        %s316 = scalar_lea.vmem [#allocation13], %s315
        %s317 = sadd.s32 %s33, %s35
        %p318 = scmp.lt.s32.totalorder %s317, 0
        %s319 = scalar_select %p318, %s317, 0
        %s320 = sadd.s32 %s33, %s35
        %p321 = scmp.lt.s32.totalorder %s320, 0
        %s322 = scalar_select %p321, %s320, 0
        %p323 = scmp.eq.s32.totalorder %s35, 0
        // Predicated region
        $region37: #{tpu_custom_call.1} parent=27 // pred_check
          %p324 = pneg %p323
        $region38: #{tpu_custom_call.1} parent=27 // pred_check_branch
          %326 = sbr.rel (%p324) target = $region40
        $region39: #{tpu_custom_call.1} parent=27 // pred_region
          %327 = vst [vmem:[#allocation2] sm:$0xff] 0.0
          %328 = vst [vmem:[#allocation3] sm:$0xff] 0.0
          %329 = vst [vmem:[#allocation4] sm:$0xff] 0.0
        $region40: #{tpu_custom_call.1} parent=27 // pred_fallthru
          _
        %v330 = vld [vmem:[%s268] sm:$0xf]
        %v331 = vunpack.c.l.bf16 %v330
        %v332 = vld [vmem:[%s277] sm:$0xf]
        %v333 = vunpack.c.l.bf16 %v332
        %v334 = vmul.f32 %v331, %v333
        %v335 = vadd.f32 %v334, 0.0
        %v336 = vadd.f32 %v331, 0.0
        %v337 = vadd.f32 %v333, 0.0
        %v338 = vadd.f32 %v335, 0.0
        %v339 = vadd.f32 %v336, 0.0
        %v340 = vadd.f32 %v337, 0.0
        %v341 = vld [vmem:[#allocation2] sm:$0xff]
        %v342 = vadd.f32 %v341, %v338
        %343 = vst [vmem:[#allocation2] sm:$0xff] %v342
        %v344 = vld [vmem:[#allocation3] sm:$0xff]
        %v345 = vadd.f32 %v344, %v339
        %346 = vst [vmem:[#allocation3] sm:$0xff] %v345
        %v347 = vld [vmem:[#allocation4] sm:$0xff]
        %v348 = vadd.f32 %v347, %v340
        %349 = vst [vmem:[#allocation4] sm:$0xff] %v348
        // Predicated region
        $region41: #{tpu_custom_call.1} parent=27 // pred_check
          %p350 = pneg %p323
        $region42: #{tpu_custom_call.1} parent=27 // pred_check_branch
          %352 = sbr.rel (%p350) target = $region44
        $region43: #{tpu_custom_call.1} parent=27 // pred_region
          %v353 = vld [vmem:[#allocation2] sm:$0xff]
          %354 = vst [vmem:[%s302] sm:$0xff] %v353
          %v355 = vld [vmem:[#allocation3] sm:$0xff]
          %356 = vst [vmem:[%s309] sm:$0xff] %v355
          %v357 = vld [vmem:[#allocation4] sm:$0xff]
          %358 = vst [vmem:[%s316] sm:$0xff] %v357
        $region44: #{tpu_custom_call.1} parent=27 // pred_fallthru
          _
        %s359 = sand.u32 %s125, 1
        %s360 = scalar_lea.sflag [#allocation7], %s359
        %s361 = sand.u32 %s125, 1
        %s362 = smul.addr %s361, 8
        %s363 = scalar_lea.vmem [#allocation10], %s362
        %s364 = sand.u32 %s28, 1
        %s365 = scalar_lea.sflag [#allocation12], %s364
        %s366 = sand.u32 %s153, 1
        %s367 = smul.addr %s366, 8
        %s368 = scalar_lea.vmem [#allocation11], %s367
        %s369 = sand.u32 %s28, 1
        %s370 = scalar_lea.sflag [#allocation12], %s369
        %s371 = sand.u32 %s181, 1
        %s372 = smul.addr %s371, 8
        %s373 = scalar_lea.vmem [#allocation13], %s372
        // Predicated region
        $region45: #{tpu_custom_call.1} parent=27 // pred_check
          %p374 = pneg %p135
        $region46: #{tpu_custom_call.1} parent=27 // pred_check_branch
          %376 = sbr.rel (%p374) target = $region48
        $region47: #{tpu_custom_call.1} parent=27 // pred_region
          %s378 = ssub.s32 128, 128
          %379 = vsyncadd %s360, %s378
          %s380 = smul.addr %s33, 2
          %s381 = sadd.s32 %s34, %s380
          %s382 = smul.addr %s381, 128
          %s383 = scalar_lea.hbm %s2, %s382
          %s385 = sshll.u32 %s363, 4
          %s386 = int_to_ptr.vmem [resolvable:$true] %s385
          %388 = dma.vmem_to_hbm [thread:$0]  %s386, 128, %s383, %s360
        $region48: #{tpu_custom_call.1} parent=27 // pred_fallthru
          _
        // Predicated region
        $region49: #{tpu_custom_call.1} parent=27 // pred_check
          %p389 = pneg %p163
        $region50: #{tpu_custom_call.1} parent=27 // pred_check_branch
          %391 = sbr.rel (%p389) target = $region52
        $region51: #{tpu_custom_call.1} parent=27 // pred_region
          %s393 = ssub.s32 128, 128
          %394 = vsyncadd %s365, %s393
          %s395 = smul.addr %s33, 2
          %s396 = sadd.s32 %s34, %s395
          %s397 = smul.addr %s396, 128
          %s398 = scalar_lea.hbm %s3, %s397
          %s400 = sshll.u32 %s368, 4
          %s401 = int_to_ptr.vmem [resolvable:$true] %s400
          %403 = dma.vmem_to_hbm [thread:$0]  %s401, 128, %s398, %s365
        $region52: #{tpu_custom_call.1} parent=27 // pred_fallthru
          _
        // Predicated region
        $region53: #{tpu_custom_call.1} parent=27 // pred_check
          %p404 = pneg %p191
        $region54: #{tpu_custom_call.1} parent=27 // pred_check_branch
          %406 = sbr.rel (%p404) target = $region56
        $region55: #{tpu_custom_call.1} parent=27 // pred_region
          %s408 = ssub.s32 128, 128
          %409 = vsyncadd %s370, %s408
          %s410 = smul.addr %s33, 2
          %s411 = sadd.s32 %s34, %s410
          %s412 = smul.addr %s411, 128
          %s413 = scalar_lea.hbm %s4, %s412
          %s415 = sshll.u32 %s373, 4
          %s416 = int_to_ptr.vmem [resolvable:$true] %s415
          %418 = dma.vmem_to_hbm [thread:$0]  %s416, 128, %s413, %s370
        $region56: #{tpu_custom_call.1} parent=27 // pred_fallthru
          _
      $region28: #{tpu_custom_call.1} parent=5 // pred_fallthru
        _
      %p419 = scmp.le.s32.totalorder 2, %s23
      // Predicated region
      $region57: #{tpu_custom_call.1} parent=5 // pred_check
        %p420 = pneg %p419
      $region58: #{tpu_custom_call.1} parent=5 // pred_check_branch
        %422 = sbr.rel (%p420) target = $region60
      $region59: #{tpu_custom_call.1} parent=5 // pred_region
        %s423 = ssub.s32 %s23, 2
        // Predicated region
        $region61: #{tpu_custom_call.1} parent=59 // pred_check
          %p424 = pneg %p141
        $region62: #{tpu_custom_call.1} parent=59 // pred_check_branch
          %426 = sbr.rel (%p424) target = $region64
        $region63: #{tpu_custom_call.1} parent=59 // pred_region
          %s427 = sand.u32 %s126, 1
          %s428 = scalar_lea.sflag [#allocation7], %s427
          %s429 = sand.u32 %s126, 1
          %s430 = smul.addr %s429, 8
          %s431 = scalar_lea.vmem [#allocation10], %s430
          %432 = dma.done %s428, 128
        $region64: #{tpu_custom_call.1} parent=59 // pred_fallthru
          _
        // Predicated region
        $region65: #{tpu_custom_call.1} parent=59 // pred_check
          %p433 = pneg %p169
        $region66: #{tpu_custom_call.1} parent=59 // pred_check_branch
          %435 = sbr.rel (%p433) target = $region68
        $region67: #{tpu_custom_call.1} parent=59 // pred_region
          %s436 = sand.u32 %s29, 1
          %s437 = scalar_lea.sflag [#allocation12], %s436
          %s438 = sand.u32 %s154, 1
          %s439 = smul.addr %s438, 8
          %s440 = scalar_lea.vmem [#allocation11], %s439
          %441 = dma.done %s437, 128
        $region68: #{tpu_custom_call.1} parent=59 // pred_fallthru
          _
        // Predicated region
        $region69: #{tpu_custom_call.1} parent=59 // pred_check
          %p442 = pneg %p197
        $region70: #{tpu_custom_call.1} parent=59 // pred_check_branch
          %444 = sbr.rel (%p442) target = $region72
        $region71: #{tpu_custom_call.1} parent=59 // pred_region
          %s445 = sand.u32 %s29, 1
          %s446 = scalar_lea.sflag [#allocation12], %s445
          %s447 = sand.u32 %s182, 1
          %s448 = smul.addr %s447, 8
          %s449 = scalar_lea.vmem [#allocation13], %s448
          %450 = dma.done %s446, 128
        $region72: #{tpu_custom_call.1} parent=59 // pred_fallthru
          _
      $region60: #{tpu_custom_call.1} parent=5 // pred_fallthru
        _
    $region6: #{tpu_custom_call.1} parent=1 // loop_footer
      %s27 = sadd.s32 1, %s23
    $region7: #{tpu_custom_call.1} parent=1 // loop_footer_branch
      %22 = sbr.rel target = $region3
    $region8: #{tpu_custom_call.1} parent=1 // loop_exit
      _
    %451 = vsyncpa [#allocation6], 1
    %s452 = scalar_lea.sflag [#allocation6], 1
    %453 = vsyncpa %s452, 1
    %454 = vsyncpa [#allocation9], 1
    %s455 = scalar_lea.sflag [#allocation9], 1
    %456 = vsyncpa %s455, 1
    %457 = vsyncpa [#allocation7], 1
    %s458 = scalar_lea.sflag [#allocation7], 1
    %459 = vsyncpa %s458, 1
    %460 = vsyncpa [#allocation12], 1
    %s461 = scalar_lea.sflag [#allocation12], 1
    %462 = vsyncpa %s461, 1

</llo_original>
